<compile_context>
chip_gen: v7x
topology: tpu7x:2x2x1
jax: 0.10.0
libtpu: 0.0.40
codegen_flags: <defaults>
</compile_context>

<pallas_src>
import functools

import jax
import jax.numpy as jnp
from jax.experimental import pallas as pl
from jax.experimental.pallas import tpu as pltpu


def _encoder_c_kernel(x_ref, w1_ref, b1_ref, w2_ref, b2_ref, out_ref):
    """Fused two-head MLP: out = relu(x @ W1 + b1) @ W2_blockdiag + b2."""
    h = jnp.dot(x_ref[...], w1_ref[...],
                preferred_element_type=jnp.float32) + b1_ref[...]
    h = jnp.maximum(h, 0.0)
    out_ref[...] = jnp.dot(h, w2_ref[...],
                           preferred_element_type=jnp.float32) + b2_ref[...]


@functools.partial(jax.jit, static_argnames=("dim_z", "class_num"))
def encoder_c(class_vector, params, *, dim_z, class_num):
    """class_vector: (B, class_num) float32 -> (mu, log_var), each (B, dim_z)."""
    B = class_vector.shape[0]
    C = class_num
    Zh = dim_z // 2

    # ---- fuse the two heads (done once, outside the kernel) ----------------
    # layer 1: [W_mu1 | W_lv1]  -> (C, dim_z)
    w1_cat = jnp.concatenate([params["wm1"], params["wv1"]], axis=1)
    b1_cat = jnp.concatenate([params["bm1"], params["bv1"]], axis=0).reshape(1, dim_z)
    # layer 2: block-diagonal so the mu-hidden only feeds mu and lv-hidden only feeds lv
    w2_block = jnp.zeros((dim_z, 2 * dim_z), jnp.float32)
    w2_block = w2_block.at[:Zh, :dim_z].set(params["wm2"])
    w2_block = w2_block.at[Zh:, dim_z:].set(params["wv2"])
    b2_cat = jnp.concatenate([params["bm2"], params["bv2"]], axis=0).reshape(1, 2 * dim_z)

    # ---- batch tiling: sublane-aligned tile, parallel grid axis ------------
    x = class_vector.astype(jnp.float32)
    TB = 8 if B >= 8 else B                      # sublane-aligned batch tile
    Bp = ((B + TB - 1) // TB) * TB
    if Bp != B:
        x = jnp.pad(x, ((0, Bp - B), (0, 0)))
    grid = (Bp // TB,)

    out = pl.pallas_call(
        _encoder_c_kernel,
        out_shape=jax.ShapeDtypeStruct((Bp, 2 * dim_z), jnp.float32),
        grid=grid,
        in_specs=[
            pl.BlockSpec((TB, C), lambda i: (i, 0)),            # class_vector tile
            pl.BlockSpec((C, dim_z), lambda i: (0, 0)),          # fused W1
            pl.BlockSpec((1, dim_z), lambda i: (0, 0)),          # fused b1
            pl.BlockSpec((dim_z, 2 * dim_z), lambda i: (0, 0)),  # block-diag W2
            pl.BlockSpec((1, 2 * dim_z), lambda i: (0, 0)),      # fused b2
        ],
        out_specs=pl.BlockSpec((TB, 2 * dim_z), lambda i: (i, 0)),
        compiler_params=pltpu.CompilerParams(
            dimension_semantics=("parallel",)),
    )(x, w1_cat, b1_cat, w2_block, b2_cat)

    out = out[:B]
    return out[:, :dim_z], out[:, dim_z:]


# ---------------------------------------------------------------------------
# Pure-JAX reference (literal translation of the PyTorch module).
# ---------------------------------------------------------------------------
def reference(class_vector, params):
    mu = jax.nn.relu(class_vector @ params["wm1"] + params["bm1"])
    mu = mu @ params["wm2"] + params["bm2"]
    lv = jax.nn.relu(class_vector @ params["wv1"] + params["bv1"])
    lv = lv @ params["wv2"] + params["bv2"]
    return mu, lv


def make_params(key, dim_z, class_num):
    Zh = dim_z // 2
    ks = jax.random.split(key, 8)
    n = lambda k, shape, s=0.1: s * jax.random.normal(k, shape, jnp.float32)
    # Stored as (in, out); equivalent to PyTorch nn.Linear weight.T
    return {
        "wm1": n(ks[0], (class_num, Zh)), "bm1": n(ks[1], (Zh,)),
        "wm2": n(ks[2], (Zh, dim_z)),     "bm2": n(ks[3], (dim_z,)),
        "wv1": n(ks[4], (class_num, Zh)), "bv1": n(ks[5], (Zh,)),
        "wv2": n(ks[6], (Zh, dim_z)),     "bv2": n(ks[7], (dim_z,)),
    }


if __name__ == "__main__":
    dim_z, class_num, B = 64, 10, 8

    key = jax.random.PRNGKey(0)
    k_x, k_p = jax.random.split(key)
    class_vector = jax.random.normal(k_x, (B, class_num), jnp.float32)
    params = make_params(k_p, dim_z, class_num)

    mu, log_var = encoder_c(class_vector, params, dim_z=dim_z, class_num=class_num)
    jax.block_until_ready((mu, log_var))

    mu_ref, lv_ref = reference(class_vector, params)
    assert mu.shape == (B, dim_z) and log_var.shape == (B, dim_z)
    assert jnp.allclose(mu, mu_ref, atol=1e-5, rtol=1e-5)
    assert jnp.allclose(log_var, lv_ref, atol=1e-5, rtol=1e-5)

    print("KERNEL_OK")
</pallas_src>

<mosaic_0001>
module attributes {stable_mosaic.version = 11 : i64} {
  func.func @_encoder_c_kernel(%arg0: i32, %arg1: memref<8x10xf32, #tpu.memory_space<vmem>>, %arg2: memref<10x64xf32, #tpu.memory_space<vmem>>, %arg3: memref<1x64xf32, #tpu.memory_space<vmem>>, %arg4: memref<64x128xf32, #tpu.memory_space<vmem>>, %arg5: memref<1x128xf32, #tpu.memory_space<vmem>>, %arg6: memref<8x128xf32, #tpu.memory_space<vmem>>) attributes {dimension_semantics = [#tpu.dimension_semantics<parallel>], iteration_bounds = array<i64: 1>, scalar_prefetch = 0 : i64, scratch_operands = 0 : i64, tpu.core_type = #tpu.core_type<tc>, window_params = [{transform_indices = @transform_0, window_bounds = array<i64: 8, 10>}, {pipeline_mode = #tpu.pipeline_mode<synchronous>, transform_indices = @transform_1, window_bounds = array<i64: 10, 64>}, {pipeline_mode = #tpu.pipeline_mode<synchronous>, transform_indices = @transform_2, window_bounds = array<i64: 1, 64>}, {pipeline_mode = #tpu.pipeline_mode<synchronous>, transform_indices = @transform_3, window_bounds = array<i64: 64, 128>}, {pipeline_mode = #tpu.pipeline_mode<synchronous>, transform_indices = @transform_4, window_bounds = array<i64: 1, 128>}, {transform_indices = @transform_5, window_bounds = array<i64: 8, 128>}]} {
    %c0 = arith.constant 0 : index
    %c0_0 = arith.constant 0 : index
    %0 = vector.load %arg1[%c0, %c0_0] : memref<8x10xf32, #tpu.memory_space<vmem>>, vector<8x10xf32>
    %c0_1 = arith.constant 0 : index
    %c0_2 = arith.constant 0 : index
    %1 = vector.load %arg2[%c0_1, %c0_2] : memref<10x64xf32, #tpu.memory_space<vmem>>, vector<10x64xf32>
    %cst = arith.constant dense<0.000000e+00> : vector<8x64xf32>
    %2 = tpu.matmul %0, %1, %cst {dimension_numbers = #tpu.dot_dimension_numbers<[1], [0], [0], [1], [0, 0, 1, 1], [], []>} : vector<8x10xf32>, vector<10x64xf32>, vector<8x64xf32> -> vector<8x64xf32>
    %c0_3 = arith.constant 0 : index
    %c0_4 = arith.constant 0 : index
    %3 = vector.load %arg3[%c0_3, %c0_4] : memref<1x64xf32, #tpu.memory_space<vmem>>, vector<1x64xf32>
    %4 = vector.broadcast %3 : vector<1x64xf32> to vector<8x64xf32>
    %5 = arith.addf %2, %4 : vector<8x64xf32>
    %cst_5 = arith.constant 0.000000e+00 : f32
    %6 = vector.broadcast %cst_5 : f32 to vector<8x64xf32>
    %7 = arith.maximumf %5, %6 : vector<8x64xf32>
    %c0_6 = arith.constant 0 : index
    %c0_7 = arith.constant 0 : index
    %8 = vector.load %arg4[%c0_6, %c0_7] : memref<64x128xf32, #tpu.memory_space<vmem>>, vector<64x128xf32>
    %cst_8 = arith.constant dense<0.000000e+00> : vector<8x128xf32>
    %9 = tpu.matmul %7, %8, %cst_8 {dimension_numbers = #tpu.dot_dimension_numbers<[1], [0], [0], [1], [0, 0, 1, 1], [], []>} : vector<8x64xf32>, vector<64x128xf32>, vector<8x128xf32> -> vector<8x128xf32>
    %c0_9 = arith.constant 0 : index
    %c0_10 = arith.constant 0 : index
    %10 = vector.load %arg5[%c0_9, %c0_10] : memref<1x128xf32, #tpu.memory_space<vmem>>, vector<1x128xf32>
    %11 = vector.broadcast %10 : vector<1x128xf32> to vector<8x128xf32>
    %12 = arith.addf %9, %11 : vector<8x128xf32>
    %c0_11 = arith.constant 0 : index
    %c0_12 = arith.constant 0 : index
    %13 = vector.load %arg6[%c0_11, %c0_12] : memref<8x128xf32, #tpu.memory_space<vmem>>, vector<8x128xf32>
    tpu.vector_store %arg6[%c0_11, %c0_12], %12 {strides = array<i32>} : memref<8x128xf32, #tpu.memory_space<vmem>>, vector<8x128xf32>,
    return
  }
  func.func @transform_0(%arg0: i32) -> (i32, i32) {
    %c0_i32 = arith.constant 0 : i32
    %c0_i32_0 = arith.constant 0 : i32
    return %arg0, %c0_i32 : i32, i32
  }
  func.func @transform_1(%arg0: i32) -> (i32, i32) {
    %c0_i32 = arith.constant 0 : i32
    %c0_i32_0 = arith.constant 0 : i32
    %c0_i32_1 = arith.constant 0 : i32
    return %c0_i32, %c0_i32_0 : i32, i32
  }
  func.func @transform_2(%arg0: i32) -> (i32, i32) {
    %c0_i32 = arith.constant 0 : i32
    %c0_i32_0 = arith.constant 0 : i32
    %c0_i32_1 = arith.constant 0 : i32
    return %c0_i32, %c0_i32_0 : i32, i32
  }
  func.func @transform_3(%arg0: i32) -> (i32, i32) {
    %c0_i32 = arith.constant 0 : i32
    %c0_i32_0 = arith.constant 0 : i32
    %c0_i32_1 = arith.constant 0 : i32
    return %c0_i32, %c0_i32_0 : i32, i32
  }
  func.func @transform_4(%arg0: i32) -> (i32, i32) {
    %c0_i32 = arith.constant 0 : i32
    %c0_i32_0 = arith.constant 0 : i32
    %c0_i32_1 = arith.constant 0 : i32
    return %c0_i32, %c0_i32_0 : i32, i32
  }
  func.func @transform_5(%arg0: i32) -> (i32, i32) {
    %c0_i32 = arith.constant 0 : i32
    %c0_i32_0 = arith.constant 0 : i32
    return %arg0, %c0_i32 : i32, i32
  }
}

</mosaic_0001>

<llo_original>
// kernel: encoder_c.1
$region0: #{encoder_c.1}
  #allocation0 [shape = 'u32[]', space=smem, size = 0x4, offset = 0x4, fixed_abs, tag = 'smem constant byte address 0x4 - core index']
  #allocation1 [shape = 'u32[144,128]{1,0:T(1,128)}', space=vmem, size = 0x12000, scoped, tag = 'internal scratch']
  %s0 = inlined_call_operand.vmem [shape: f32[8,10], index: 0, kind: input, shape index: {}]
  %s1 = inlined_call_operand.vmem [shape: f32[10,64], index: 1, kind: input, shape index: {}]
  %s2 = inlined_call_operand.vmem [shape: f32[1,64], index: 2, kind: input, shape index: {}]
  %s3 = inlined_call_operand.vmem [shape: f32[64,128], index: 3, kind: input, shape index: {}]
  %s4 = inlined_call_operand.vmem [shape: f32[1,128], index: 4, kind: input, shape index: {}]
  %s5 = inlined_call_operand.vmem [shape: f32[8,128], index: 5, kind: output, shape index: {}]
  %s6 = sld [smem:[#allocation0]]
  $region30: #{encoder_c.1} parent=0
    _
  %s8 = ssub.s32 1, %s6
  %s9 = scalar_select 0, %s8, %s6
  // Predicated region
  $region2: #{encoder_c.1} parent=0 // pred_check
    _
  $region3: #{encoder_c.1} parent=0 // pred_check_branch
    %11 = sbr.rel (0) target = $region5
  $region4: #{encoder_c.1} parent=0 // pred_region
    _
  $region5: #{encoder_c.1} parent=0 // pred_fallthru
    _
  // Predicated region
  $region6: #{encoder_c.1} parent=0 // pred_check
    _
  $region7: #{encoder_c.1} parent=0 // pred_check_branch
    %13 = sbr.rel (0) target = $region9
  $region8: #{encoder_c.1} parent=0 // pred_region
    _
  $region9: #{encoder_c.1} parent=0 // pred_fallthru
    _
  // Predicated region
  $region10: #{encoder_c.1} parent=0 // pred_check
    _
  $region11: #{encoder_c.1} parent=0 // pred_check_branch
    %15 = sbr.rel (0) target = $region13
  $region12: #{encoder_c.1} parent=0 // pred_region
    _
  $region13: #{encoder_c.1} parent=0 // pred_fallthru
    _
  // Predicated region
  $region14: #{encoder_c.1} parent=0 // pred_check
    _
  $region15: #{encoder_c.1} parent=0 // pred_check_branch
    %17 = sbr.rel (0) target = $region17
  $region16: #{encoder_c.1} parent=0 // pred_region
    _
  $region17: #{encoder_c.1} parent=0 // pred_fallthru
    _
  // Predicated region
  $region18: #{encoder_c.1} parent=0 // pred_check
    _
  $region19: #{encoder_c.1} parent=0 // pred_check_branch
    %19 = sbr.rel (0) target = $region21
  $region20: #{encoder_c.1} parent=0 // pred_region
    _
  $region21: #{encoder_c.1} parent=0 // pred_fallthru
    _
  %v20 = vld [vmem:[%s0] sm:$0xff]
  %v21 = vld [vmem:[%s1] sm:$0xff]
  %v22 = vld [vmem:[%s1 + $0x8] sm:$0x3]
  %v23 = vld [vmem:[%s2] sm:$0x1]
  %v25 = vlaneseq
  %v26 = vshrl.u32 %v25, 7
  %v27 = vsub.s32 0, %v26
  %v28 = vrot.slane %v23, %v27
  %vm30 = vcmask 80896
  %v32 = vsel %vm30, %v20, 0
  %vm34 = vcmask 1041408
  %v36 = vsel %vm34, %v22, 0
  %38 = vmatprep.subr.mxu0 0.0
  %39 = vmatpush1.msra.mxu0 %v21
  %40 = vmatprep.subr.mxu0 0.0
  %41 = vmatpush1.msra.mxu0 %v36
  %42 = vmatprep.subr.mxu0 0.0
  %43 = vmatpush1.msra.mxu0 0.0
  %44 = vmatprep.subr.mxu0 0.0
  %45 = vmatpush1.msra.mxu0 0.0
  %46 = vmatprep.subr.mxu0 0.0
  %47 = vmatpush1.msra.mxu0 0.0
  %48 = vmatprep.subr.mxu0 0.0
  %49 = vmatpush1.msra.mxu0 0.0
  %50 = vmatprep.subr.mxu0 0.0
  %51 = vmatpush1.msra.mxu0 0.0
  %52 = vmatprep.subr.mxu0 0.0
  %53 = vmatpush1.msra.mxu0 0.0
  %54 = vmatprep.subr.mxu0 0.0
  %55 = vmatpush1.msra.mxu0 0.0
  %56 = vmatprep.subr.mxu0 0.0
  %57 = vmatpush1.msra.mxu0 0.0
  %58 = vmatprep.subr.mxu0 0.0
  %59 = vmatpush1.msra.mxu0 0.0
  %60 = vmatprep.subr.mxu0 0.0
  %61 = vmatpush1.msra.mxu0 0.0
  %62 = vmatprep.subr.mxu0 0.0
  %63 = vmatpush1.msra.mxu0 0.0
  %64 = vmatprep.subr.mxu0 0.0
  %65 = vmatpush1.msra.mxu0 0.0
  %66 = vmatprep.subr.mxu0 0.0
  %67 = vmatpush1.msra.mxu0 0.0
  %68 = vmatprep.subr.mxu0 0.0
  %69 = vmatpush1.msra.mxu0 0.0
  %70 = vmatprep.subr.mxu0 0.0
  %71 = vmatpush1.msra.mxu0 0.0
  %72 = vmatprep.subr.mxu0 0.0
  %73 = vmatpush1.msra.mxu0 0.0
  %74 = vmatprep.subr.mxu0 0.0
  %75 = vmatpush1.msra.mxu0 0.0
  %76 = vmatprep.subr.mxu0 0.0
  %77 = vmatpush1.msra.mxu0 0.0
  %78 = vmatprep.subr.mxu0 0.0
  %79 = vmatpush1.msra.mxu0 0.0
  %80 = vmatprep.subr.mxu0 0.0
  %81 = vmatpush1.msra.mxu0 0.0
  %82 = vmatprep.subr.mxu0 0.0
  %83 = vmatpush1.msra.mxu0 0.0
  %84 = vmatprep.subr.mxu0 0.0
  %85 = vmatpush1.msra.mxu0 0.0
  %86 = vmatprep.subr.mxu0 0.0
  %87 = vmatpush1.msra.mxu0 0.0
  %88 = vmatprep.subr.mxu0 0.0
  %89 = vmatpush1.msra.mxu0 0.0
  %90 = vmatprep.subr.mxu0 0.0
  %91 = vmatpush1.msra.mxu0 0.0
  %92 = vmatprep.subr.mxu0 0.0
  %93 = vmatpush1.msra.mxu0 0.0
  %94 = vmatprep.subr.mxu0 0.0
  %95 = vmatpush1.msra.mxu0 0.0
  %96 = vmatprep.subr.mxu0 0.0
  %97 = vmatpush1.msra.mxu0 0.0
  %98 = vmatprep.subr.mxu0 0.0
  %99 = vmatpush1.msra.mxu0 0.0
  %100 = vmatprep.subr.mxu0 0.0
  %101 = vmatpush1.msra.mxu0 0.0
  %102 = vmatprep.mubr.f32.mxu0 0.0
  %103 = vmatmul.mubr.f32.gmra.mrb[0].mxu0 %v32
  %v104 = vpop.f32.mrb[0].mxu0
  %v105 = vadd.f32 %v28, %v104
  %v106 = vpop.f32.mrb[0].mxu0
  %107 = vdwg.mxu0
  %v108 = vmax.f32 %v105, 0.0
  %v109 = vld [vmem:[%s3] sm:$0xff]
  %v110 = vld [vmem:[%s3 + $0x8] sm:$0xff]
  %v111 = vld [vmem:[%s3 + $0x10] sm:$0xff]
  %v112 = vld [vmem:[%s3 + $0x18] sm:$0xff]
  %v113 = vld [vmem:[%s3 + $0x20] sm:$0xff]
  %v114 = vld [vmem:[%s3 + $0x28] sm:$0xff]
  %v115 = vld [vmem:[%s3 + $0x30] sm:$0xff]
  %v116 = vld [vmem:[%s3 + $0x38] sm:$0xff]
  %v117 = vld [vmem:[%s4] sm:$0x1]
  %v119 = vlaneseq
  %v120 = vshrl.u32 %v119, 7
  %v121 = vsub.s32 0, %v120
  %v122 = vrot.slane %v117, %v121
  %vm124 = vcmask 523264
  %v126 = vsel %vm124, %v108, 0
  %128 = vmatprep.subr.mxu0 0.0
  %129 = vmatpush1.msra.mxu0 %v109
  %130 = vmatprep.subr.mxu0 0.0
  %131 = vmatpush1.msra.mxu0 %v110
  %132 = vmatprep.subr.mxu0 0.0
  %133 = vmatpush1.msra.mxu0 %v111
  %134 = vmatprep.subr.mxu0 0.0
  %135 = vmatpush1.msra.mxu0 %v112
  %136 = vmatprep.subr.mxu0 0.0
  %137 = vmatpush1.msra.mxu0 %v113
  %138 = vmatprep.subr.mxu0 0.0
  %139 = vmatpush1.msra.mxu0 %v114
  %140 = vmatprep.subr.mxu0 0.0
  %141 = vmatpush1.msra.mxu0 %v115
  %142 = vmatprep.subr.mxu0 0.0
  %143 = vmatpush1.msra.mxu0 %v116
  %144 = vmatprep.subr.mxu0 0.0
  %145 = vmatpush1.msra.mxu0 0.0
  %146 = vmatprep.subr.mxu0 0.0
  %147 = vmatpush1.msra.mxu0 0.0
  %148 = vmatprep.subr.mxu0 0.0
  %149 = vmatpush1.msra.mxu0 0.0
  %150 = vmatprep.subr.mxu0 0.0
  %151 = vmatpush1.msra.mxu0 0.0
  %152 = vmatprep.subr.mxu0 0.0
  %153 = vmatpush1.msra.mxu0 0.0
  %154 = vmatprep.subr.mxu0 0.0
  %155 = vmatpush1.msra.mxu0 0.0
  %156 = vmatprep.subr.mxu0 0.0
  %157 = vmatpush1.msra.mxu0 0.0
  %158 = vmatprep.subr.mxu0 0.0
  %159 = vmatpush1.msra.mxu0 0.0
  %160 = vmatprep.subr.mxu0 0.0
  %161 = vmatpush1.msra.mxu0 0.0
  %162 = vmatprep.subr.mxu0 0.0
  %163 = vmatpush1.msra.mxu0 0.0
  %164 = vmatprep.subr.mxu0 0.0
  %165 = vmatpush1.msra.mxu0 0.0
  %166 = vmatprep.subr.mxu0 0.0
  %167 = vmatpush1.msra.mxu0 0.0
  %168 = vmatprep.subr.mxu0 0.0
  %169 = vmatpush1.msra.mxu0 0.0
  %170 = vmatprep.subr.mxu0 0.0
  %171 = vmatpush1.msra.mxu0 0.0
  %172 = vmatprep.subr.mxu0 0.0
  %173 = vmatpush1.msra.mxu0 0.0
  %174 = vmatprep.subr.mxu0 0.0
  %175 = vmatpush1.msra.mxu0 0.0
  %176 = vmatprep.subr.mxu0 0.0
  %177 = vmatpush1.msra.mxu0 0.0
  %178 = vmatprep.subr.mxu0 0.0
  %179 = vmatpush1.msra.mxu0 0.0
  %180 = vmatprep.subr.mxu0 0.0
  %181 = vmatpush1.msra.mxu0 0.0
  %182 = vmatprep.subr.mxu0 0.0
  %183 = vmatpush1.msra.mxu0 0.0
  %184 = vmatprep.subr.mxu0 0.0
  %185 = vmatpush1.msra.mxu0 0.0
  %186 = vmatprep.subr.mxu0 0.0
  %187 = vmatpush1.msra.mxu0 0.0
  %188 = vmatprep.subr.mxu0 0.0
  %189 = vmatpush1.msra.mxu0 0.0
  %190 = vmatprep.subr.mxu0 0.0
  %191 = vmatpush1.msra.mxu0 0.0
  %192 = vmatprep.mubr.f32.mxu0 0.0
  %193 = vmatmul.mubr.f32.gmra.mrb[0].mxu0 %v126
  %v194 = vpop.f32.mrb[0].mxu0
  %v195 = vadd.f32 %v122, %v194
  %v196 = vpop.f32.mrb[0].mxu0
  %197 = vdwg.mxu0
  %198 = vst [vmem:[%s5] sm:$0xff] %v195
  // Predicated region
  $region22: #{encoder_c.1} parent=0 // pred_check
    _
  $region23: #{encoder_c.1} parent=0 // pred_check_branch
    %200 = sbr.rel (0) target = $region25
  $region24: #{encoder_c.1} parent=0 // pred_region
    _
  $region25: #{encoder_c.1} parent=0 // pred_fallthru
    _
  // Predicated region
  $region26: #{encoder_c.1} parent=0 // pred_check
    _
  $region27: #{encoder_c.1} parent=0 // pred_check_branch
    %202 = sbr.rel (0) target = $region29
  $region28: #{encoder_c.1} parent=0 // pred_region
    _
  $region29: #{encoder_c.1} parent=0 // pred_fallthru
    _

</llo_original>
